<compile_context>
chip_gen: v7x
topology: tpu7x:2x2x1
jax: 0.10.0
libtpu: 0.0.40
codegen_flags: <defaults>
</compile_context>

<pallas_src>
import jax
import jax.numpy as jnp
from jax.experimental import pallas as pl
from jax.experimental.pallas import tpu as pltpu


def _round_up(a, b):
    return ((a + b - 1) // b) * b


def _vmem_capacity_bytes():
    """Physical VMEM of the current chip; conservative fallback (v7x = 64 MiB)."""
    try:
        info = pltpu.get_tpu_info()
        cap = getattr(info, "vmem_capacity_bytes", None)
        if cap:
            return int(cap)
    except Exception:
        pass
    return 64 * 1024 * 1024


def _working_set_bytes(tm, th, in_p, out_p):
    """Per-grid-step VMEM working set (double-buffered blocks + scratch)."""
    return (2 * in_p * 2 * th * 2      # fused gate-weight tile, double-buffered (bf16)
            + 2 * th * out_p * 2       # output-projection weight tile, double-buffered
            + 2 * tm * in_p * 2        # x tile, double-buffered
            + 2 * tm * out_p * 2       # output tile, double-buffered
            + tm * out_p * 4           # f32 accumulator scratch
            + tm * 2 * th * 4)         # f32 first-stage matmul temp


def _swiglu_kernel(x_ref, wio_ref, wo_ref, o_ref, acc_ref):
    # x_ref:   (TM, IN_P)           bf16  (resident across the hidden grid axis)
    # wio_ref: (1, IN_P, 2*TILE_H)  bf16  [ silu weight tile | gate weight tile ]
    # wo_ref:  (TILE_H, OUT_P)      bf16
    # o_ref:   (TM, OUT_P)          bf16
    # acc_ref: (TM, OUT_P)          f32   scratch accumulator
    h = pl.program_id(1)
    tile_h = wo_ref.shape[0]

    # Single fused first-stage matmul: (TM, IN) @ (IN, 2*TILE_H) on the MXU.
    hcat = jnp.dot(x_ref[...], wio_ref[0],
                   preferred_element_type=jnp.float32)
    h_silu = hcat[:, :tile_h]          # static, lane-tile-aligned split (free)
    h_gate = hcat[:, tile_h:]

    # Stable SiLU in f32 (logistic runs on the EUP slot).
    act = (h_silu * jax.nn.sigmoid(h_silu) * h_gate).astype(wo_ref.dtype)

    # Second-stage matmul, accumulated in f32 across the hidden grid axis.
    contrib = jnp.dot(act, wo_ref[...], preferred_element_type=jnp.float32)

    @pl.when(h == 0)
    def _():
        acc_ref[...] = contrib          # direct write: no zero-init round trip

    @pl.when(h > 0)
    def _():
        acc_ref[...] += contrib

    @pl.when(h == pl.num_programs(1) - 1)
    def _():
        o_ref[...] = acc_ref[...].astype(o_ref.dtype)


def make_swiglu(w_silu, w_gate, w_out, *, max_tile_m=512, max_tile_h=512):
    """Prepare (pad + fuse) weights once and return a jitted forward(x) closure.

    w_silu: (in_features, hidden)   pre-transposed nn.Linear weight
    w_gate: (in_features, hidden)
    w_out:  (hidden, out_features)
    """
    in_f, hid = w_silu.shape
    out_f = w_out.shape[1]

    in_p = _round_up(in_f, 128)
    out_p = _round_up(out_f, 128)

    vmem_cap = _vmem_capacity_bytes()
    budget = int(vmem_cap * 0.70)               # headroom for compiler scratch
    vmem_limit = int(min(vmem_cap * 0.80, 100 * 1024 * 1024))
    vmem_limit = max(vmem_limit, 32 * 1024 * 1024)

    # ---- choose hidden tile so the worst-case (max_tile_m) step fits VMEM ---
    tile_h = min(max_tile_h, _round_up(hid, 128))
    probe_tm = min(max_tile_m, 512)
    while tile_h > 128 and _working_set_bytes(probe_tm, tile_h, in_p, out_p) > budget:
        tile_h -= 128

    hid_p = _round_up(hid, tile_h)
    n_h = hid_p // tile_h

    # ---- pad + fuse weights ONCE (zero padding is exact for SwiGLU) ---------
    ws_p = jnp.pad(jnp.asarray(w_silu, jnp.bfloat16),
                   ((0, in_p - in_f), (0, hid_p - hid)))
    wg_p = jnp.pad(jnp.asarray(w_gate, jnp.bfloat16),
                   ((0, in_p - in_f), (0, hid_p - hid)))
    wo_p = jnp.pad(jnp.asarray(w_out, jnp.bfloat16),
                   ((0, hid_p - hid), (0, out_p - out_f)))

    # Tile-major fused layout: block h is [silu tile h | gate tile h], fully
    # contiguous in HBM so each per-step weight DMA is a single linear copy.
    ws3 = ws_p.reshape(in_p, n_h, tile_h).transpose(1, 0, 2)   # (n_h, in_p, tile_h)
    wg3 = wg_p.reshape(in_p, n_h, tile_h).transpose(1, 0, 2)
    w_fused = jnp.concatenate([ws3, wg3], axis=2)              # (n_h, in_p, 2*tile_h)

    def forward(x):
        orig_shape = x.shape
        x2d = jnp.asarray(x, jnp.bfloat16).reshape(-1, in_f)
        m = x2d.shape[0]

        m16 = _round_up(m, 16)                 # bf16 packs 16 rows per vreg
        tm = min(max_tile_m, m16)
        # Keep >=2 M tiles when there is enough work so the "parallel" axis
        # actually shards across v7x's two TensorCores.
        if tm == m16 and m16 >= 64:
            tm = _round_up(-(-m16 // 2), 16)
        # Shrink tm further if the working set still exceeds the VMEM budget.
        while tm > 16 and _working_set_bytes(tm, tile_h, in_p, out_p) > budget:
            tm = max(16, _round_up(tm // 2, 16))

        m_p = _round_up(m16, tm)
        n_m = m_p // tm

        x_p = jnp.pad(x2d, ((0, m_p - m), (0, in_p - in_f)))

        cost = pl.CostEstimate(
            flops=2 * m_p * (in_p * 2 * hid_p + hid_p * out_p),
            transcendentals=m_p * hid_p,
            bytes_accessed=(2 * m_p * (in_p + out_p)
                            + 2 * n_m * (in_p * 2 * hid_p + hid_p * out_p)),
        )

        out = pl.pallas_call(
            _swiglu_kernel,
            out_shape=jax.ShapeDtypeStruct((m_p, out_p), jnp.bfloat16),
            grid=(n_m, n_h),
            in_specs=[
                pl.BlockSpec((tm, in_p), lambda i, h: (i, 0)),
                pl.BlockSpec((1, in_p, 2 * tile_h), lambda i, h: (h, 0, 0)),
                pl.BlockSpec((tile_h, out_p), lambda i, h: (h, 0)),
            ],
            out_specs=pl.BlockSpec((tm, out_p), lambda i, h: (i, 0)),
            scratch_shapes=[pltpu.VMEM((tm, out_p), jnp.float32)],
            compiler_params=pltpu.CompilerParams(
                dimension_semantics=("parallel", "arbitrary"),
                vmem_limit_bytes=vmem_limit,
            ),
            cost_estimate=cost,
        )(x_p, w_fused, wo_p)

        return out[:m, :out_f].reshape(*orig_shape[:-1], out_f)

    return jax.jit(forward)


def init_swiglu_params(key, in_features, out_features, dtype=jnp.bfloat16):
    """Deterministic synthetic init (nn.Linear-style uniform), pre-transposed."""
    hidden = int(out_features * 2)
    k1, k2, k3 = jax.random.split(key, 3)
    bound_in = 1.0 / (in_features ** 0.5)
    bound_hid = 1.0 / (hidden ** 0.5)
    # nn.Linear weight is (out, in); we store the transpose (in, out) directly.
    w_silu = jax.random.uniform(k1, (in_features, hidden), jnp.float32,
                                -bound_in, bound_in).astype(dtype)
    w_gate = jax.random.uniform(k2, (in_features, hidden), jnp.float32,
                                -bound_in, bound_in).astype(dtype)
    w_out = jax.random.uniform(k3, (hidden, out_features), jnp.float32,
                               -bound_hid, bound_hid).astype(dtype)
    return w_silu, w_gate, w_out


def swiglu_ref(x, w_silu, w_gate, w_out):
    """Pure-JAX reference for sanity checking."""
    x = x.astype(jnp.bfloat16)
    hs = jnp.dot(x, w_silu, preferred_element_type=jnp.float32)
    hg = jnp.dot(x, w_gate, preferred_element_type=jnp.float32)
    h = (hs * jax.nn.sigmoid(hs) * hg).astype(jnp.bfloat16)
    return jnp.dot(h, w_out, preferred_element_type=jnp.float32).astype(jnp.bfloat16)


if __name__ == "__main__":
    key = jax.random.PRNGKey(0)
    k_x, k_w = jax.random.split(key)

    batch, seq = 2, 8
    in_features, out_features = 32, 32   # hidden = 64

    x = jax.random.normal(k_x, (batch, seq, in_features), jnp.float32)
    w_silu, w_gate, w_out = init_swiglu_params(k_w, in_features, out_features)

    swiglu = make_swiglu(w_silu, w_gate, w_out)
    y = swiglu(x)
    y = jax.block_until_ready(y)

    y_ref = swiglu_ref(x, w_silu, w_gate, w_out)
    assert y.shape == (batch, seq, out_features)
    assert y.dtype == jnp.bfloat16
    err = jnp.max(jnp.abs(y.astype(jnp.float32) - y_ref.astype(jnp.float32)))
    assert float(err) < 1e-1, f"mismatch vs reference: {err}"

    print("KERNEL_OK")
</pallas_src>

<mosaic_0001>
module attributes {stable_mosaic.version = 11 : i64} {
  func.func @_swiglu_kernel(%arg0: i32, %arg1: i32, %arg2: memref<16x128xbf16, #tpu.memory_space<vmem>>, %arg3: memref<1x128x256xbf16, #tpu.memory_space<vmem>>, %arg4: memref<128x128xbf16, #tpu.memory_space<vmem>>, %arg5: memref<16x128xbf16, #tpu.memory_space<vmem>>, %arg6: memref<16x128xf32, #tpu.memory_space<vmem>>) attributes {dimension_semantics = [#tpu.dimension_semantics<parallel>, #tpu.dimension_semantics<arbitrary>], iteration_bounds = array<i64: 1, 1>, scalar_prefetch = 0 : i64, scratch_operands = 1 : i64, tpu.core_type = #tpu.core_type<tc>, window_params = [{transform_indices = @transform_0, window_bounds = array<i64: 16, 128>}, {transform_indices = @transform_1, window_bounds = array<i64: 1, 128, 256>}, {transform_indices = @transform_2, window_bounds = array<i64: 128, 128>}, {transform_indices = @transform_3, window_bounds = array<i64: 16, 128>}]} {
    %c0 = arith.constant 0 : index
    %c0_0 = arith.constant 0 : index
    %0 = vector.load %arg2[%c0, %c0_0] : memref<16x128xbf16, #tpu.memory_space<vmem>>, vector<16x128xbf16>
    %c0_1 = arith.constant 0 : index
    %c0_2 = arith.constant 0 : index
    %c0_3 = arith.constant 0 : index
    %1 = vector.load %arg3[%c0_1, %c0_2, %c0_3] : memref<1x128x256xbf16, #tpu.memory_space<vmem>>, vector<1x128x256xbf16>
    %2 = vector.shape_cast %1 : vector<1x128x256xbf16> to vector<128x256xbf16>
    %cst = arith.constant dense<0.000000e+00> : vector<16x256xf32>
    %3 = tpu.matmul %0, %2, %cst {dimension_numbers = #tpu.dot_dimension_numbers<[1], [0], [0], [1], [0, 0, 1, 1], [], []>} : vector<16x128xbf16>, vector<128x256xbf16>, vector<16x256xf32> -> vector<16x256xf32>
    %4 = vector.extract_strided_slice %3 {offsets = [0, 0], sizes = [16, 128], strides = [1, 1]} : vector<16x256xf32> to vector<16x128xf32>
    %5 = vector.extract_strided_slice %3 {offsets = [0, 128], sizes = [16, 128], strides = [1, 1]} : vector<16x256xf32> to vector<16x128xf32>
    %6 = arith.negf %4 : vector<16x128xf32>
    %7 = math.exp %6 : vector<16x128xf32>
    %cst_4 = arith.constant 1.000000e+00 : f32
    %8 = vector.broadcast %cst_4 : f32 to vector<16x128xf32>
    %9 = arith.addf %8, %7 : vector<16x128xf32>
    %10 = arith.divf %8, %9 : vector<16x128xf32>
    %11 = arith.mulf %4, %10 : vector<16x128xf32>
    %12 = arith.mulf %11, %5 : vector<16x128xf32>
    %13 = arith.truncf %12 : vector<16x128xf32> to vector<16x128xbf16>
    %c0_5 = arith.constant 0 : index
    %c0_6 = arith.constant 0 : index
    %14 = vector.load %arg4[%c0_5, %c0_6] : memref<128x128xbf16, #tpu.memory_space<vmem>>, vector<128x128xbf16>
    %cst_7 = arith.constant dense<0.000000e+00> : vector<16x128xf32>
    %15 = tpu.matmul %13, %14, %cst_7 {dimension_numbers = #tpu.dot_dimension_numbers<[1], [0], [0], [1], [0, 0, 1, 1], [], []>} : vector<16x128xbf16>, vector<128x128xbf16>, vector<16x128xf32> -> vector<16x128xf32>
    %c0_i32 = arith.constant 0 : i32
    %16 = arith.cmpi eq, %arg1, %c0_i32 : i32
    %17 = arith.extui %16 : i1 to i32
    %c0_i32_8 = arith.constant 0 : i32
    %18 = arith.cmpi ne, %17, %c0_i32_8 : i32
    scf.if %18 {
      %c0_13 = arith.constant 0 : index
      %c0_14 = arith.constant 0 : index
      %25 = vector.load %arg6[%c0_13, %c0_14] : memref<16x128xf32, #tpu.memory_space<vmem>>, vector<16x128xf32>
      tpu.vector_store %arg6[%c0_13, %c0_14], %15 {strides = array<i32>} : memref<16x128xf32, #tpu.memory_space<vmem>>, vector<16x128xf32>,
    } else {
    }
    %c0_i32_9 = arith.constant 0 : i32
    %19 = arith.cmpi sgt, %arg1, %c0_i32_9 : i32
    %20 = arith.extui %19 : i1 to i32
    %c0_i32_10 = arith.constant 0 : i32
    %21 = arith.cmpi ne, %20, %c0_i32_10 : i32
    scf.if %21 {
      %c0_13 = arith.constant 0 : index
      %c0_14 = arith.constant 0 : index
      %25 = vector.load %arg6[%c0_13, %c0_14] : memref<16x128xf32, #tpu.memory_space<vmem>>, vector<16x128xf32>
      %26 = arith.addf %25, %15 : vector<16x128xf32>
      %c0_15 = arith.constant 0 : index
      %c0_16 = arith.constant 0 : index
      %27 = vector.load %arg6[%c0_15, %c0_16] : memref<16x128xf32, #tpu.memory_space<vmem>>, vector<16x128xf32>
      tpu.vector_store %arg6[%c0_15, %c0_16], %26 {strides = array<i32>} : memref<16x128xf32, #tpu.memory_space<vmem>>, vector<16x128xf32>,
    } else {
    }
    %c0_i32_11 = arith.constant 0 : i32
    %22 = arith.cmpi eq, %arg1, %c0_i32_11 : i32
    %23 = arith.extui %22 : i1 to i32
    %c0_i32_12 = arith.constant 0 : i32
    %24 = arith.cmpi ne, %23, %c0_i32_12 : i32
    scf.if %24 {
      %c0_13 = arith.constant 0 : index
      %c0_14 = arith.constant 0 : index
      %25 = vector.load %arg6[%c0_13, %c0_14] : memref<16x128xf32, #tpu.memory_space<vmem>>, vector<16x128xf32>
      %26 = arith.truncf %25 : vector<16x128xf32> to vector<16x128xbf16>
      %c0_15 = arith.constant 0 : index
      %c0_16 = arith.constant 0 : index
      %27 = vector.load %arg5[%c0_15, %c0_16] : memref<16x128xbf16, #tpu.memory_space<vmem>>, vector<16x128xbf16>
      tpu.vector_store %arg5[%c0_15, %c0_16], %26 {strides = array<i32>} : memref<16x128xbf16, #tpu.memory_space<vmem>>, vector<16x128xbf16>,
    } else {
    }
    return
  }
  func.func @transform_0(%arg0: i32, %arg1: i32) -> (i32, i32) {
    %c0_i32 = arith.constant 0 : i32
    %c0_i32_0 = arith.constant 0 : i32
    return %arg0, %c0_i32 : i32, i32
  }
  func.func @transform_1(%arg0: i32, %arg1: i32) -> (i32, i32, i32) {
    %c0_i32 = arith.constant 0 : i32
    %c0_i32_0 = arith.constant 0 : i32
    %c0_i32_1 = arith.constant 0 : i32
    return %arg1, %c0_i32, %c0_i32_0 : i32, i32, i32
  }
  func.func @transform_2(%arg0: i32, %arg1: i32) -> (i32, i32) {
    %c0_i32 = arith.constant 0 : i32
    %c0_i32_0 = arith.constant 0 : i32
    return %arg1, %c0_i32 : i32, i32
  }
  func.func @transform_3(%arg0: i32, %arg1: i32) -> (i32, i32) {
    %c0_i32 = arith.constant 0 : i32
    %c0_i32_0 = arith.constant 0 : i32
    return %arg0, %c0_i32 : i32, i32
  }
}

</mosaic_0001>

<llo_original>
// kernel: forward.1
$region0: #{forward.1}
  #allocation0 [shape = 'u32[]', space=smem, size = 0x4, offset = 0x4, fixed_abs, tag = 'smem constant byte address 0x4 - core index']
  #allocation1 [shape = 'u32[144,128]{1,0:T(1,128)}', space=vmem, size = 0x12000, scoped, tag = 'internal scratch']
  #allocation2 [shape = 'f32[16,128]{1,0:T(8,128)}', space=vmem, size = 0x2000, scoped, tag = 'scratch operand']
  %s0 = inlined_call_operand.vmem [shape: bf16[16,128], index: 0, kind: input, shape index: {}]
  %s1 = inlined_call_operand.vmem [shape: bf16[1,128,256], index: 1, kind: input, shape index: {}]
  %s2 = inlined_call_operand.vmem [shape: bf16[128,128], index: 2, kind: input, shape index: {}]
  %s3 = inlined_call_operand.vmem [shape: bf16[16,128], index: 3, kind: output, shape index: {}]
  %s4 = sld [smem:[#allocation0]]
  $region34: #{forward.1} parent=0
    _
  %s6 = ssub.s32 1, %s4
  %s7 = scalar_select 0, %s6, %s4
  // Predicated region
  $region2: #{forward.1} parent=0 // pred_check
    _
  $region3: #{forward.1} parent=0 // pred_check_branch
    %9 = sbr.rel (0) target = $region5
  $region4: #{forward.1} parent=0 // pred_region
    _
  $region5: #{forward.1} parent=0 // pred_fallthru
    _
  // Predicated region
  $region6: #{forward.1} parent=0 // pred_check
    _
  $region7: #{forward.1} parent=0 // pred_check_branch
    %11 = sbr.rel (0) target = $region9
  $region8: #{forward.1} parent=0 // pred_region
    _
  $region9: #{forward.1} parent=0 // pred_fallthru
    _
  // Predicated region
  $region10: #{forward.1} parent=0 // pred_check
    _
  $region11: #{forward.1} parent=0 // pred_check_branch
    %13 = sbr.rel (0) target = $region13
  $region12: #{forward.1} parent=0 // pred_region
    _
  $region13: #{forward.1} parent=0 // pred_fallthru
    _
  %v15 = vld [vmem:[%s0] sm:$0xf]
  %v16 = vld [vmem:[%s0 + $0x4] sm:$0xf]
  %v17 = vld [vmem:[%s1] sm:$0xff]
  %v18 = vld [vmem:[%s1 + $0x8] sm:$0xff]
  %v19 = vld [vmem:[%s1 + $0x10] sm:$0xff]
  %v20 = vld [vmem:[%s1 + $0x18] sm:$0xff]
  %v21 = vld [vmem:[%s1 + $0x20] sm:$0xff]
  %v22 = vld [vmem:[%s1 + $0x28] sm:$0xff]
  %v23 = vld [vmem:[%s1 + $0x30] sm:$0xff]
  %v24 = vld [vmem:[%s1 + $0x38] sm:$0xff]
  %v25 = vld [vmem:[%s1 + $0x40] sm:$0xff]
  %v26 = vld [vmem:[%s1 + $0x48] sm:$0xff]
  %v27 = vld [vmem:[%s1 + $0x50] sm:$0xff]
  %v28 = vld [vmem:[%s1 + $0x58] sm:$0xff]
  %v29 = vld [vmem:[%s1 + $0x60] sm:$0xff]
  %v30 = vld [vmem:[%s1 + $0x68] sm:$0xff]
  %v31 = vld [vmem:[%s1 + $0x70] sm:$0xff]
  %v32 = vld [vmem:[%s1 + $0x78] sm:$0xff]
  %v35 = vunpack.c.l.b16 %v15
  %v36 = vunpack.c.l.b16 %v16
  %v37 = vpack.c.b16 %v36, %v35
  %v55 = vunpack.c.l.b16 %v17
  %v56 = vunpack.c.h.b16 %v17
  %v57 = vunpack.c.l.b16 %v18
  %v58 = vunpack.c.h.b16 %v18
  %v59 = vunpack.c.l.b16 %v19
  %v60 = vunpack.c.h.b16 %v19
  %v61 = vunpack.c.l.b16 %v20
  %v62 = vunpack.c.h.b16 %v20
  %v63 = vunpack.c.l.b16 %v21
  %v64 = vunpack.c.h.b16 %v21
  %v65 = vunpack.c.l.b16 %v22
  %v66 = vunpack.c.h.b16 %v22
  %v67 = vunpack.c.l.b16 %v23
  %v68 = vunpack.c.h.b16 %v23
  %v69 = vunpack.c.l.b16 %v24
  %v70 = vunpack.c.h.b16 %v24
  %v71 = vunpack.c.l.b16 %v25
  %v72 = vunpack.c.h.b16 %v25
  %v73 = vunpack.c.l.b16 %v26
  %v74 = vunpack.c.h.b16 %v26
  %v75 = vunpack.c.l.b16 %v27
  %v76 = vunpack.c.h.b16 %v27
  %v77 = vunpack.c.l.b16 %v28
  %v78 = vunpack.c.h.b16 %v28
  %v79 = vunpack.c.l.b16 %v29
  %v80 = vunpack.c.h.b16 %v29
  %v81 = vunpack.c.l.b16 %v30
  %v82 = vunpack.c.h.b16 %v30
  %v83 = vunpack.c.l.b16 %v31
  %v84 = vunpack.c.h.b16 %v31
  %v85 = vunpack.c.l.b16 %v32
  %v86 = vunpack.c.h.b16 %v32
  %v87 = vpack.c.b16 %v57, %v55
  %v88 = vpack.c.b16 %v58, %v56
  %v89 = vpack.c.b16 %v61, %v59
  %v90 = vpack.c.b16 %v62, %v60
  %v91 = vpack.c.b16 %v65, %v63
  %v92 = vpack.c.b16 %v66, %v64
  %v93 = vpack.c.b16 %v69, %v67
  %v94 = vpack.c.b16 %v70, %v68
  %v95 = vpack.c.b16 %v73, %v71
  %v96 = vpack.c.b16 %v74, %v72
  %v97 = vpack.c.b16 %v77, %v75
  %v98 = vpack.c.b16 %v78, %v76
  %v99 = vpack.c.b16 %v81, %v79
  %v100 = vpack.c.b16 %v82, %v80
  %v101 = vpack.c.b16 %v85, %v83
  %v102 = vpack.c.b16 %v86, %v84
  %119 = vmatprep.subr.bf16.mxu0 %v88
  %120 = vmatpush1.bf16.msra.mxu0 %v87
  %121 = vmatprep.subr.bf16.mxu0 %v90
  %122 = vmatpush1.bf16.msra.mxu0 %v89
  %123 = vmatprep.subr.bf16.mxu0 %v92
  %124 = vmatpush1.bf16.msra.mxu0 %v91
  %125 = vmatprep.subr.bf16.mxu0 %v94
  %126 = vmatpush1.bf16.msra.mxu0 %v93
  %127 = vmatprep.subr.bf16.mxu0 %v96
  %128 = vmatpush1.bf16.msra.mxu0 %v95
  %129 = vmatprep.subr.bf16.mxu0 %v98
  %130 = vmatpush1.bf16.msra.mxu0 %v97
  %131 = vmatprep.subr.bf16.mxu0 %v100
  %132 = vmatpush1.bf16.msra.mxu0 %v99
  %133 = vmatprep.subr.bf16.mxu0 %v102
  %134 = vmatpush1.bf16.msra.mxu0 %v101
  %135 = vmatprep.subr.bf16.mxu0 0
  %136 = vmatpush1.bf16.msra.mxu0 0
  %137 = vmatprep.subr.bf16.mxu0 0
  %138 = vmatpush1.bf16.msra.mxu0 0
  %139 = vmatprep.subr.bf16.mxu0 0
  %140 = vmatpush1.bf16.msra.mxu0 0
  %141 = vmatprep.subr.bf16.mxu0 0
  %142 = vmatpush1.bf16.msra.mxu0 0
  %143 = vmatprep.subr.bf16.mxu0 0
  %144 = vmatpush1.bf16.msra.mxu0 0
  %145 = vmatprep.subr.bf16.mxu0 0
  %146 = vmatpush1.bf16.msra.mxu0 0
  %147 = vmatprep.subr.bf16.mxu0 0
  %148 = vmatpush1.bf16.msra.mxu0 0
  %149 = vmatprep.subr.bf16.mxu0 0
  %150 = vmatpush1.bf16.msra.mxu0 0
  %151 = vmatprep.mubr.bf16.mxu0 0
  %152 = vmatmul.mubr.bf16.gmra.mrb[0].mxu0 %v37
  %v153 = vpop.f32.mrb[0].mxu0
  %v154 = vadd.f32 0.0, %v153
  %v155 = vpop.f32.mrb[0].mxu0
  %v156 = vadd.f32 0.0, %v155
  %v157 = vpop.f32.mrb[0].mxu0
  %v158 = vadd.f32 0.0, %v157
  %v159 = vpop.f32.mrb[0].mxu0
  %v160 = vadd.f32 0.0, %v159
  %161 = vdwg.mxu0
  %v162 = vxor.u32 %v154, 2147483648
  %v163 = vxor.u32 %v158, 2147483648
  %v164 = vmul.f32 %v162, 1.442695
  %v165 = vpow.pop %v164
  %v166 = vmul.f32 %v163, 1.442695
  %v167 = vpow.pop %v166
  %v168 = vadd.f32 %v165, 1.0
  %v169 = vadd.f32 %v167, 1.0
  %v170 = vrcp.pop %v168
  %v171 = vmul.f32 1.0, %v170
  %v172 = vrcp.pop %v169
  %v173 = vmul.f32 1.0, %v172
  %v174 = vmul.f32 %v154, %v171
  %v175 = vmul.f32 %v158, %v173
  %v176 = vmul.f32 %v174, %v156
  %v177 = vmul.f32 %v175, %v160
  %v178 = vpack.c.bf16 %v177, %v176
  %v179 = vld [vmem:[%s2] sm:$0xf]
  %v180 = vld [vmem:[%s2 + $0x4] sm:$0xf]
  %v181 = vld [vmem:[%s2 + $0x8] sm:$0xf]
  %v182 = vld [vmem:[%s2 + $0xc] sm:$0xf]
  %v183 = vld [vmem:[%s2 + $0x10] sm:$0xf]
  %v184 = vld [vmem:[%s2 + $0x14] sm:$0xf]
  %v185 = vld [vmem:[%s2 + $0x18] sm:$0xf]
  %v186 = vld [vmem:[%s2 + $0x1c] sm:$0xf]
  %v187 = vld [vmem:[%s2 + $0x20] sm:$0xf]
  %v188 = vld [vmem:[%s2 + $0x24] sm:$0xf]
  %v189 = vld [vmem:[%s2 + $0x28] sm:$0xf]
  %v190 = vld [vmem:[%s2 + $0x2c] sm:$0xf]
  %v191 = vld [vmem:[%s2 + $0x30] sm:$0xf]
  %v192 = vld [vmem:[%s2 + $0x34] sm:$0xf]
  %v193 = vld [vmem:[%s2 + $0x38] sm:$0xf]
  %v194 = vld [vmem:[%s2 + $0x3c] sm:$0xf]
  %v211 = vunpack.c.l.b16 %v179
  %v212 = vunpack.c.l.b16 %v180
  %v213 = vunpack.c.l.b16 %v181
  %v214 = vunpack.c.l.b16 %v182
  %v215 = vunpack.c.l.b16 %v183
  %v216 = vunpack.c.l.b16 %v184
  %v217 = vunpack.c.l.b16 %v185
  %v218 = vunpack.c.l.b16 %v186
  %v219 = vunpack.c.l.b16 %v187
  %v220 = vunpack.c.l.b16 %v188
  %v221 = vunpack.c.l.b16 %v189
  %v222 = vunpack.c.l.b16 %v190
  %v223 = vunpack.c.l.b16 %v191
  %v224 = vunpack.c.l.b16 %v192
  %v225 = vunpack.c.l.b16 %v193
  %v226 = vunpack.c.l.b16 %v194
  %v227 = vpack.c.b16 %v212, %v211
  %v228 = vpack.c.b16 %v214, %v213
  %v229 = vpack.c.b16 %v216, %v215
  %v230 = vpack.c.b16 %v218, %v217
  %v231 = vpack.c.b16 %v220, %v219
  %v232 = vpack.c.b16 %v222, %v221
  %v233 = vpack.c.b16 %v224, %v223
  %v234 = vpack.c.b16 %v226, %v225
  %243 = vmatprep.subr.bf16.mxu0 0
  %244 = vmatpush1.bf16.msra.mxu0 %v227
  %245 = vmatprep.subr.bf16.mxu0 0
  %246 = vmatpush1.bf16.msra.mxu0 %v228
  %247 = vmatprep.subr.bf16.mxu0 0
  %248 = vmatpush1.bf16.msra.mxu0 %v229
  %249 = vmatprep.subr.bf16.mxu0 0
  %250 = vmatpush1.bf16.msra.mxu0 %v230
  %251 = vmatprep.subr.bf16.mxu0 0
  %252 = vmatpush1.bf16.msra.mxu0 %v231
  %253 = vmatprep.subr.bf16.mxu0 0
  %254 = vmatpush1.bf16.msra.mxu0 %v232
  %255 = vmatprep.subr.bf16.mxu0 0
  %256 = vmatpush1.bf16.msra.mxu0 %v233
  %257 = vmatprep.subr.bf16.mxu0 0
  %258 = vmatpush1.bf16.msra.mxu0 %v234
  %259 = vmatprep.subr.bf16.mxu0 0
  %260 = vmatpush1.bf16.msra.mxu0 0
  %261 = vmatprep.subr.bf16.mxu0 0
  %262 = vmatpush1.bf16.msra.mxu0 0
  %263 = vmatprep.subr.bf16.mxu0 0
  %264 = vmatpush1.bf16.msra.mxu0 0
  %265 = vmatprep.subr.bf16.mxu0 0
  %266 = vmatpush1.bf16.msra.mxu0 0
  %267 = vmatprep.subr.bf16.mxu0 0
  %268 = vmatpush1.bf16.msra.mxu0 0
  %269 = vmatprep.subr.bf16.mxu0 0
  %270 = vmatpush1.bf16.msra.mxu0 0
  %271 = vmatprep.subr.bf16.mxu0 0
  %272 = vmatpush1.bf16.msra.mxu0 0
  %273 = vmatprep.subr.bf16.mxu0 0
  %274 = vmatpush1.bf16.msra.mxu0 0
  %275 = vmatprep.mubr.bf16.mxu0 0
  %276 = vmatmul.mubr.bf16.gmra.mrb[0].mxu0 %v178
  %v277 = vpop.f32.mrb[0].mxu0
  %v278 = vadd.f32 0.0, %v277
  %v279 = vpop.f32.mrb[0].mxu0
  %v280 = vpop.f32.mrb[0].mxu0
  %v281 = vadd.f32 0.0, %v280
  %v282 = vpop.f32.mrb[0].mxu0
  %283 = vdwg.mxu0
  %p284 = scmp.eq.s32.totalorder 0, 0
  // Predicated region
  $region14: #{forward.1} parent=0 // pred_check
    %p285 = pneg %p284
  $region15: #{forward.1} parent=0 // pred_check_branch
    %287 = sbr.rel (%p285) target = $region17
  $region16: #{forward.1} parent=0 // pred_region
    %288 = vst [vmem:[#allocation2] sm:$0xff] %v278
    %289 = vst [vmem:[#allocation2 + $0x8] sm:$0xff] %v281
  $region17: #{forward.1} parent=0 // pred_fallthru
    _
  %p290 = scmp.gt.s32.totalorder 0, 0
  // Predicated region
  $region18: #{forward.1} parent=0 // pred_check
    %p291 = pneg %p290
  $region19: #{forward.1} parent=0 // pred_check_branch
    %293 = sbr.rel (%p291) target = $region21
  $region20: #{forward.1} parent=0 // pred_region
    %v294 = vld [vmem:[#allocation2] sm:$0xff]
    %v295 = vld [vmem:[#allocation2 + $0x8] sm:$0xff]
    %v296 = vadd.f32 %v294, %v278
    %v297 = vadd.f32 %v295, %v281
    %298 = vst [vmem:[#allocation2] sm:$0xff] %v296
    %299 = vst [vmem:[#allocation2 + $0x8] sm:$0xff] %v297
  $region21: #{forward.1} parent=0 // pred_fallthru
    _
  // Predicated region
  $region22: #{forward.1} parent=0 // pred_check
    %p300 = pneg %p284
  $region23: #{forward.1} parent=0 // pred_check_branch
    %302 = sbr.rel (%p300) target = $region25
  $region24: #{forward.1} parent=0 // pred_region
    %v303 = vld [vmem:[#allocation2] sm:$0xff]
    %v304 = vld [vmem:[#allocation2 + $0x8] sm:$0xff]
    %v305 = vpack.c.bf16 %v304, %v303
    %v307 = vunpack.c.l.b16 %v305
    %v308 = vunpack.c.h.b16 %v305
    %v309 = vpack.c.b16 %v307, %v307
    %v310 = vpack.c.b16 %v308, %v308
    %313 = vst [vmem:[%s3] sm:$0xf] %v309
    %314 = vst [vmem:[%s3 + $0x4] sm:$0xf] %v310
  $region25: #{forward.1} parent=0 // pred_fallthru
    _
  // Predicated region
  $region26: #{forward.1} parent=0 // pred_check
    _
  $region27: #{forward.1} parent=0 // pred_check_branch
    %316 = sbr.rel (0) target = $region29
  $region28: #{forward.1} parent=0 // pred_region
    _
  $region29: #{forward.1} parent=0 // pred_fallthru
    _
  // Predicated region
  $region30: #{forward.1} parent=0 // pred_check
    _
  $region31: #{forward.1} parent=0 // pred_check_branch
    %318 = sbr.rel (0) target = $region33
  $region32: #{forward.1} parent=0 // pred_region
    _
  $region33: #{forward.1} parent=0 // pred_fallthru
    _

</llo_original>
